<compile_context>
chip_gen: v7x
topology: tpu7x:2x2x1
jax: 0.10.0
libtpu: 0.0.40
codegen_flags: <defaults>
</compile_context>

<pallas_src>
import functools
import math

import numpy as np
import jax
import jax.numpy as jnp
from jax.experimental import pallas as pl
from jax.experimental.pallas import tpu as pltpu

_EPS = 1e-5


def _round_up(n, m):
    return ((n + m - 1) // m) * m


# ------------------------------ Pallas kernel -------------------------------

def _pgnn_fused_kernel(x_ref, w_ref, f_ref, o_ref, *, n_enc):
    """Whole PGNN forward (eval mode), single invocation.

    x_ref : (B, D)           f32   input, zero-padded to D lanes
    w_ref : (n_enc+2, D, D)  bf16  BN-folded weights; blocks 0..n_enc-1 are the
                                   encoder layers, block n_enc is the fused head
                                   first layers (column-concatenated), block
                                   n_enc+1 is the fused head second layers
                                   (block-diagonal)
    f_ref : (8, D)           f32   rows 0..n_enc-1: encoder biases,
                                   row n_enc: head-1 bias, row n_enc+1: head-2
                                   bias, row n_enc+2: clamp lo, n_enc+3: clamp hi
    o_ref : (B, D)           f32   lane-dense output slab
    """
    h = x_ref[...]                                         # (B, D) f32
    for i in range(n_enc):                                 # encoder: Linear+BN+ReLU (folded)
        h = jnp.maximum(
            jnp.dot(h.astype(jnp.bfloat16), w_ref[i],
                    preferred_element_type=jnp.float32)
            + f_ref[i:i + 1, :], 0.0)

    # fused heads: one matmul for all first layers, one for all second layers
    g = jnp.maximum(
        jnp.dot(h.astype(jnp.bfloat16), w_ref[n_enc],
                preferred_element_type=jnp.float32)
        + f_ref[n_enc:n_enc + 1, :], 0.0)
    y = (jnp.dot(g.astype(jnp.bfloat16), w_ref[n_enc + 1],
                 preferred_element_type=jnp.float32)
         + f_ref[n_enc + 1:n_enc + 2, :])

    # prec clamp: min-then-max against per-lane constants (matches torch order);
    # non-prec lanes see +/-FLT_MAX so they pass through untouched.
    lo = f_ref[n_enc + 2:n_enc + 3, :]
    hi = f_ref[n_enc + 3:n_enc + 4, :]
    o_ref[...] = jnp.maximum(jnp.minimum(y, hi), lo)


def make_pgnn_forward(fused):
    """Returns a jitted forward: x -> (weights, bias, prec)."""
    d = fused["d"]
    n_enc = fused["n_enc"]
    node_num = fused["node_num"]
    wsum = fused["weights_width"]
    wslab = fused["wslab"]
    fslab = fused["fslab"]

    kernel = functools.partial(_pgnn_fused_kernel, n_enc=n_enc)
    vmem = pl.BlockSpec(memory_space=pltpu.MemorySpace.VMEM)

    @jax.jit
    def fwd(x):
        b, nin = x.shape
        xp = jnp.pad(x.astype(jnp.float32), ((0, 0), (0, d - nin)))
        y = pl.pallas_call(
            kernel,
            out_shape=jax.ShapeDtypeStruct((b, d), jnp.float32),
            in_specs=[vmem, vmem, vmem],
            out_specs=vmem,
        )(xp, wslab, fslab)
        bias = y[:, :node_num]
        weights = y[:, node_num:node_num + wsum]
        prec = y[:, node_num + wsum:node_num + wsum + node_num]
        return weights, bias, prec

    return fwd


# --------------------------- parameter construction -------------------------

def init_linear(key, n_in, n_out):
    kw, kb = jax.random.split(key)
    bound = 1.0 / math.sqrt(n_in) if n_in > 0 else 0.0
    w = jax.random.uniform(kw, (n_in, n_out), jnp.float32, -bound, bound)
    b = jax.random.uniform(kb, (n_out,), jnp.float32, -bound, bound)
    return w, b


def init_bn(key, n):
    # Deterministic, non-trivial eval-mode BN params.
    k1, k2, k3, k4 = jax.random.split(key, 4)
    gamma = 1.0 + 0.1 * jax.random.normal(k1, (n,), jnp.float32)
    beta = 0.1 * jax.random.normal(k2, (n,), jnp.float32)
    mean = 0.1 * jax.random.normal(k3, (n,), jnp.float32)
    var = 1.0 + 0.1 * jnp.abs(jax.random.normal(k4, (n,), jnp.float32))
    return gamma, beta, mean, var


def fold_bn(w, b, bn):
    gamma, beta, mean, var = bn
    scale = gamma / jnp.sqrt(var + _EPS)
    shift = beta - mean * scale
    return w * scale[None, :], b * scale + shift


def init_pgnn_raw(key, nn_insize, node_parents, cf):
    node_num = len(node_parents)
    depth, cr, fsize = cf["depth"], cf["compress_rate"], cf["feature_size"]
    layer_size = [int(fsize * cr ** (depth - i)) for i in range(depth + 1)]

    keys = jax.random.split(key, 4)

    # encoder: Linear -> BN -> ReLU blocks
    enc = []
    szin = nn_insize
    ekeys = jax.random.split(keys[0], len(layer_size))
    for i, szout in enumerate(layer_size):
        k1, k2 = jax.random.split(ekeys[i])
        w, b = init_linear(k1, szin, szout)
        bn = init_bn(k2, szout)
        enc.append((w, b, bn))
        szin = szout

    # header partition (same logic as the PyTorch module)
    thresh = cf["max_header_size"]
    header_size = []
    cur_sum = node_parents[0]
    assert thresh >= 0
    for n in node_parents[1:]:
        assert n < node_num
        if cur_sum + n > thresh:
            header_size.append(cur_sum)
            cur_sum = n
        else:
            cur_sum += n
    header_size.append(cur_sum)

    def init_head(k, n_in, n_out):
        # construct_head: Linear(Nin,Nout) -> BN(Nout) -> ReLU -> Linear(Nout,Nout)
        k1, k2, k3 = jax.random.split(k, 3)
        w1, b1 = init_linear(k1, n_in, n_out)
        bn = init_bn(k2, n_out)
        w2, b2 = init_linear(k3, n_out, n_out)
        return (w1, b1, bn, w2, b2)

    bias_head = init_head(keys[1], fsize, node_num)
    hkeys = jax.random.split(keys[2], len(header_size))
    weight_heads = [init_head(hkeys[i], fsize, n)
                    for i, n in enumerate(header_size)]
    prec_head = init_head(keys[3], fsize, node_num)

    return {
        "encoder": enc,
        "bias_head": bias_head,
        "weight_heads": weight_heads,
        "prec_head": prec_head,
        "header_size": header_size,
        "node_num": node_num,
        "fsize": fsize,
        "down_thresh": float(cf["prec_thresh"][0]),
        "up_thresh": float(cf["prec_thresh"][1]),
    }


def build_fused_params(raw):
    """Fold BN into every Linear, zero-pad all dims to D (=128) lanes, and pack
    everything into one bf16 weight slab + one f32 bias/clamp slab."""
    node_num = raw["node_num"]
    fsize = raw["fsize"]
    header_size = raw["header_size"]
    enc = raw["encoder"]
    n_enc = len(enc)

    nn_insize = enc[0][0].shape[0]
    enc_out = [w.shape[1] for (w, _, _) in enc]
    out_sizes = [node_num] + list(header_size) + [node_num]
    total_out = sum(out_sizes)

    # one uniform padded width for every matmul operand (one MXU tile here)
    d = _round_up(max([128, nn_insize, fsize, total_out] + enc_out), 128)

    n_blk = n_enc + 2
    wslab = np.zeros((n_blk, d, d), np.float32)
    fslab = np.zeros((_round_up(n_enc + 4, 8), d), np.float32)

    # encoder blocks (BN folded; zero-padded rows/cols stay exactly zero)
    in_sz = nn_insize
    for i, (w, b, bn) in enumerate(enc):
        wf, bf = fold_bn(w, b, bn)
        out_sz = wf.shape[1]
        wslab[i, :in_sz, :out_sz] = np.asarray(wf)
        fslab[i, :out_sz] = np.asarray(bf)
        in_sz = out_sz

    # heads (order: bias_head, weight_heads..., prec_head):
    # first layers column-concatenated, second layers block-diagonal.
    heads = [raw["bias_head"]] + list(raw["weight_heads"]) + [raw["prec_head"]]
    off = 0
    for (w1, b1, bn, w2, b2), n in zip(heads, out_sizes):
        w1f, b1f = fold_bn(w1, b1, bn)
        wslab[n_enc, :fsize, off:off + n] = np.asarray(w1f)
        fslab[n_enc, off:off + n] = np.asarray(b1f)
        wslab[n_enc + 1, off:off + n, off:off + n] = np.asarray(w2)
        fslab[n_enc + 1, off:off + n] = np.asarray(b2)
        off += n
    # TODO(synk): if the fused head width ever exceeds one 128-lane tile, split
    # the block-diagonal second-layer matmul into per-tile matmuls.

    # per-lane prec clamp vectors (thresholds on prec lanes, +/-FLT_MAX elsewhere)
    wsum = sum(header_size)
    prec_start = node_num + wsum
    prec_end = prec_start + node_num
    fmax = float(np.finfo(np.float32).max)
    lo = np.full((d,), -fmax, np.float32)
    hi = np.full((d,), fmax, np.float32)
    lo[prec_start:prec_end] = raw["down_thresh"]
    hi[prec_start:prec_end] = raw["up_thresh"]
    fslab[n_enc + 2] = lo
    fslab[n_enc + 3] = hi

    return {
        "wslab": jnp.asarray(wslab, jnp.bfloat16),   # single bf16 weight slab
        "fslab": jnp.asarray(fslab, jnp.float32),    # biases + clamp vectors
        "d": d,
        "n_enc": n_enc,
        "node_num": node_num,
        "weights_width": wsum,
    }


# ------------------------ unfused pure-JAX reference -------------------------

def reference_forward(raw, x):
    def lin(v, w, b):
        return jnp.dot(v, w, preferred_element_type=jnp.float32) + b

    def bn(v, p):
        gamma, beta, mean, var = p
        return (v - mean) / jnp.sqrt(var + _EPS) * gamma + beta

    h = x
    for (w, b, p) in raw["encoder"]:
        h = jnp.maximum(bn(lin(h, w, b), p), 0.0)

    def head(hp, feat):
        w1, b1, p, w2, b2 = hp
        g = jnp.maximum(bn(lin(feat, w1, b1), p), 0.0)
        return lin(g, w2, b2)

    bias = head(raw["bias_head"], h)
    weights = jnp.concatenate([head(hp, h) for hp in raw["weight_heads"]],
                              axis=1)
    prec = head(raw["prec_head"], h)
    prec = jnp.minimum(prec, raw["up_thresh"])
    prec = jnp.maximum(prec, raw["down_thresh"])
    return weights, bias, prec


# ---------------------------------- main ------------------------------------

if __name__ == "__main__":
    cf = {
        "depth": 2,
        "compress_rate": 2,
        "feature_size": 32,
        "max_header_size": 4,
        "prec_thresh": (0.1, 10.0),
        "drop_out": 0.0,
    }
    node_parents = [0, 1, 2, 1, 3, 2]          # node_num = 6, sum(parents) = 9
    nn_insize = 48
    batch = 8

    key = jax.random.PRNGKey(0)
    kparam, kx = jax.random.split(key)
    raw = init_pgnn_raw(kparam, nn_insize, node_parents, cf)
    fused = build_fused_params(raw)
    pgnn_forward = make_pgnn_forward(fused)

    X = jax.random.normal(kx, (batch, nn_insize), jnp.float32)

    weights, bias, prec = pgnn_forward(X)
    jax.block_until_ready((weights, bias, prec))

    # shape / clamp semantics
    assert weights.shape == (batch, sum(node_parents))
    assert bias.shape == (batch, len(node_parents))
    assert prec.shape == (batch, len(node_parents))
    assert float(jnp.max(prec)) <= cf["prec_thresh"][1] + 1e-6
    assert float(jnp.min(prec)) >= cf["prec_thresh"][0] - 1e-6

    # numerical check vs. the unfused reference (loose: bf16 MXU passes)
    w_ref, b_ref, p_ref = reference_forward(raw, X)
    jax.block_until_ready((w_ref, b_ref, p_ref))
    np.testing.assert_allclose(np.asarray(weights), np.asarray(w_ref),
                               rtol=5e-2, atol=5e-2)
    np.testing.assert_allclose(np.asarray(bias), np.asarray(b_ref),
                               rtol=5e-2, atol=5e-2)
    np.testing.assert_allclose(np.asarray(prec), np.asarray(p_ref),
                               rtol=5e-2, atol=5e-2)

    print("KERNEL_OK")
</pallas_src>

<mosaic_0001>
module attributes {stable_mosaic.version = 11 : i64} {
  func.func @_pgnn_fused_kernel(%arg0: memref<8x128xf32, #tpu.memory_space<vmem>>, %arg1: memref<5x128x128xbf16, #tpu.memory_space<vmem>>, %arg2: memref<8x128xf32, #tpu.memory_space<vmem>>, %arg3: memref<8x128xf32, #tpu.memory_space<vmem>>) attributes {dimension_semantics = [], scalar_prefetch = 0 : i64, scratch_operands = 0 : i64, tpu.core_type = #tpu.core_type<tc>} {
    %c0 = arith.constant 0 : index
    %c0_0 = arith.constant 0 : index
    %0 = vector.load %arg0[%c0, %c0_0] : memref<8x128xf32, #tpu.memory_space<vmem>>, vector<8x128xf32>
    %1 = arith.truncf %0 : vector<8x128xf32> to vector<8x128xbf16>
    %c0_1 = arith.constant 0 : index
    %c0_2 = arith.constant 0 : index
    %c0_3 = arith.constant 0 : index
    %2 = vector.load %arg1[%c0_1, %c0_2, %c0_3] : memref<5x128x128xbf16, #tpu.memory_space<vmem>>, vector<1x128x128xbf16>
    %3 = vector.shape_cast %2 : vector<1x128x128xbf16> to vector<128x128xbf16>
    %cst = arith.constant dense<0.000000e+00> : vector<8x128xf32>
    %4 = tpu.matmul %1, %3, %cst {dimension_numbers = #tpu.dot_dimension_numbers<[1], [0], [0], [1], [0, 0, 1, 1], [], []>} : vector<8x128xbf16>, vector<128x128xbf16>, vector<8x128xf32> -> vector<8x128xf32>
    %c0_4 = arith.constant 0 : index
    %c0_5 = arith.constant 0 : index
    %5 = vector.load %arg2[%c0_4, %c0_5] : memref<8x128xf32, #tpu.memory_space<vmem>>, vector<1x128xf32>
    %6 = vector.broadcast %5 : vector<1x128xf32> to vector<8x128xf32>
    %7 = arith.addf %4, %6 : vector<8x128xf32>
    %cst_6 = arith.constant 0.000000e+00 : f32
    %8 = vector.broadcast %cst_6 : f32 to vector<8x128xf32>
    %9 = arith.maximumf %7, %8 : vector<8x128xf32>
    %10 = arith.truncf %9 : vector<8x128xf32> to vector<8x128xbf16>
    %c1 = arith.constant 1 : index
    %c0_7 = arith.constant 0 : index
    %c0_8 = arith.constant 0 : index
    %11 = vector.load %arg1[%c1, %c0_7, %c0_8] : memref<5x128x128xbf16, #tpu.memory_space<vmem>>, vector<1x128x128xbf16>
    %12 = vector.shape_cast %11 : vector<1x128x128xbf16> to vector<128x128xbf16>
    %cst_9 = arith.constant dense<0.000000e+00> : vector<8x128xf32>
    %13 = tpu.matmul %10, %12, %cst_9 {dimension_numbers = #tpu.dot_dimension_numbers<[1], [0], [0], [1], [0, 0, 1, 1], [], []>} : vector<8x128xbf16>, vector<128x128xbf16>, vector<8x128xf32> -> vector<8x128xf32>
    %c1_10 = arith.constant 1 : index
    %c0_11 = arith.constant 0 : index
    %14 = vector.load %arg2[%c1_10, %c0_11] : memref<8x128xf32, #tpu.memory_space<vmem>>, vector<1x128xf32>
    %15 = vector.broadcast %14 : vector<1x128xf32> to vector<8x128xf32>
    %16 = arith.addf %13, %15 : vector<8x128xf32>
    %cst_12 = arith.constant 0.000000e+00 : f32
    %17 = vector.broadcast %cst_12 : f32 to vector<8x128xf32>
    %18 = arith.maximumf %16, %17 : vector<8x128xf32>
    %19 = arith.truncf %18 : vector<8x128xf32> to vector<8x128xbf16>
    %c2 = arith.constant 2 : index
    %c0_13 = arith.constant 0 : index
    %c0_14 = arith.constant 0 : index
    %20 = vector.load %arg1[%c2, %c0_13, %c0_14] : memref<5x128x128xbf16, #tpu.memory_space<vmem>>, vector<1x128x128xbf16>
    %21 = vector.shape_cast %20 : vector<1x128x128xbf16> to vector<128x128xbf16>
    %cst_15 = arith.constant dense<0.000000e+00> : vector<8x128xf32>
    %22 = tpu.matmul %19, %21, %cst_15 {dimension_numbers = #tpu.dot_dimension_numbers<[1], [0], [0], [1], [0, 0, 1, 1], [], []>} : vector<8x128xbf16>, vector<128x128xbf16>, vector<8x128xf32> -> vector<8x128xf32>
    %c2_16 = arith.constant 2 : index
    %c0_17 = arith.constant 0 : index
    %23 = vector.load %arg2[%c2_16, %c0_17] : memref<8x128xf32, #tpu.memory_space<vmem>>, vector<1x128xf32>
    %24 = vector.broadcast %23 : vector<1x128xf32> to vector<8x128xf32>
    %25 = arith.addf %22, %24 : vector<8x128xf32>
    %cst_18 = arith.constant 0.000000e+00 : f32
    %26 = vector.broadcast %cst_18 : f32 to vector<8x128xf32>
    %27 = arith.maximumf %25, %26 : vector<8x128xf32>
    %28 = arith.truncf %27 : vector<8x128xf32> to vector<8x128xbf16>
    %c3 = arith.constant 3 : index
    %c0_19 = arith.constant 0 : index
    %c0_20 = arith.constant 0 : index
    %29 = vector.load %arg1[%c3, %c0_19, %c0_20] : memref<5x128x128xbf16, #tpu.memory_space<vmem>>, vector<1x128x128xbf16>
    %30 = vector.shape_cast %29 : vector<1x128x128xbf16> to vector<128x128xbf16>
    %cst_21 = arith.constant dense<0.000000e+00> : vector<8x128xf32>
    %31 = tpu.matmul %28, %30, %cst_21 {dimension_numbers = #tpu.dot_dimension_numbers<[1], [0], [0], [1], [0, 0, 1, 1], [], []>} : vector<8x128xbf16>, vector<128x128xbf16>, vector<8x128xf32> -> vector<8x128xf32>
    %c3_22 = arith.constant 3 : index
    %c0_23 = arith.constant 0 : index
    %32 = vector.load %arg2[%c3_22, %c0_23] : memref<8x128xf32, #tpu.memory_space<vmem>>, vector<1x128xf32>
    %33 = vector.broadcast %32 : vector<1x128xf32> to vector<8x128xf32>
    %34 = arith.addf %31, %33 : vector<8x128xf32>
    %cst_24 = arith.constant 0.000000e+00 : f32
    %35 = vector.broadcast %cst_24 : f32 to vector<8x128xf32>
    %36 = arith.maximumf %34, %35 : vector<8x128xf32>
    %37 = arith.truncf %36 : vector<8x128xf32> to vector<8x128xbf16>
    %c4 = arith.constant 4 : index
    %c0_25 = arith.constant 0 : index
    %c0_26 = arith.constant 0 : index
    %38 = vector.load %arg1[%c4, %c0_25, %c0_26] : memref<5x128x128xbf16, #tpu.memory_space<vmem>>, vector<1x128x128xbf16>
    %39 = vector.shape_cast %38 : vector<1x128x128xbf16> to vector<128x128xbf16>
    %cst_27 = arith.constant dense<0.000000e+00> : vector<8x128xf32>
    %40 = tpu.matmul %37, %39, %cst_27 {dimension_numbers = #tpu.dot_dimension_numbers<[1], [0], [0], [1], [0, 0, 1, 1], [], []>} : vector<8x128xbf16>, vector<128x128xbf16>, vector<8x128xf32> -> vector<8x128xf32>
    %c4_28 = arith.constant 4 : index
    %c0_29 = arith.constant 0 : index
    %41 = vector.load %arg2[%c4_28, %c0_29] : memref<8x128xf32, #tpu.memory_space<vmem>>, vector<1x128xf32>
    %42 = vector.broadcast %41 : vector<1x128xf32> to vector<8x128xf32>
    %43 = arith.addf %40, %42 : vector<8x128xf32>
    %c5 = arith.constant 5 : index
    %c0_30 = arith.constant 0 : index
    %44 = vector.load %arg2[%c5, %c0_30] : memref<8x128xf32, #tpu.memory_space<vmem>>, vector<1x128xf32>
    %c6 = arith.constant 6 : index
    %c0_31 = arith.constant 0 : index
    %45 = vector.load %arg2[%c6, %c0_31] : memref<8x128xf32, #tpu.memory_space<vmem>>, vector<1x128xf32>
    %46 = vector.broadcast %45 : vector<1x128xf32> to vector<8x128xf32>
    %47 = arith.minimumf %43, %46 : vector<8x128xf32>
    %48 = vector.broadcast %44 : vector<1x128xf32> to vector<8x128xf32>
    %49 = arith.maximumf %47, %48 : vector<8x128xf32>
    %c0_32 = arith.constant 0 : index
    %c0_33 = arith.constant 0 : index
    %50 = vector.load %arg3[%c0_32, %c0_33] : memref<8x128xf32, #tpu.memory_space<vmem>>, vector<8x128xf32>
    tpu.vector_store %arg3[%c0_32, %c0_33], %49 {strides = array<i32>} : memref<8x128xf32, #tpu.memory_space<vmem>>, vector<8x128xf32>,
    return
  }
}

</mosaic_0001>

<llo_original>
// kernel: fwd.1
$region0: #{fwd.1}
  #allocation0 [shape = 'u32[]', space=smem, size = 0x4, offset = 0x4, fixed_abs, tag = 'smem constant byte address 0x4 - core index']
  #allocation1 [shape = 'u32[144,128]{1,0:T(1,128)}', space=vmem, size = 0x12000, scoped, tag = 'internal scratch']
  %s0 = inlined_call_operand.vmem [shape: f32[8,128], index: 0, kind: input, shape index: {}]
  %s1 = inlined_call_operand.hbm [shape: bf16[5,128,128], index: 1, kind: input, shape index: {}]
  %s2 = inlined_call_operand.vmem [shape: f32[8,128], index: 2, kind: input, shape index: {}]
  %s3 = inlined_call_operand.vmem [shape: f32[8,128], index: 3, kind: output, shape index: {}]
  %s4 = sld [smem:[#allocation0]]
  $region26: #{fwd.1} parent=0
    _
  %s6 = ssub.s32 1, %s4
  %s7 = scalar_select 0, %s6, %s4
  $region1: #{fwd.1} parent=0
    #allocation2 [shape = 'u8[163840]{0}', space=vmem, size = 0x28000, scoped, tag = 'input window, operand 1, single buffered']
    #allocation3 [shape = 's32[1]{0}', space=sflag, size = 0x4, scoped, tag = 'scoped memory for fwd.1']
    %8 = vsyncpa [#allocation3], 0
    // Predicated region
    $region2: #{fwd.1} parent=1 // pred_check
      _
    $region3: #{fwd.1} parent=1 // pred_check_branch
      %10 = sbr.rel (0) target = $region5
    $region4: #{fwd.1} parent=1 // pred_region
      _
    $region5: #{fwd.1} parent=1 // pred_fallthru
      _
    // Predicated region
    $region6: #{fwd.1} parent=1 // pred_check
      _
    $region7: #{fwd.1} parent=1 // pred_check_branch
      %12 = sbr.rel (0) target = $region9
    $region8: #{fwd.1} parent=1 // pred_region
      %s14 = ssub.s32 5120, 5120
      %15 = vsyncadd [#allocation3], %s14
      %s16 = sshll.u32 [#allocation2], 4
      %s17 = int_to_ptr.vmem [resolvable:$true] %s16
      %22 = dma.hbm_to_vmem [thread:$0]  %s1, 5120, %s17, [#allocation3], 64, 64, 4
    $region9: #{fwd.1} parent=1 // pred_fallthru
      _
    // Predicated region
    $region10: #{fwd.1} parent=1 // pred_check
      _
    $region11: #{fwd.1} parent=1 // pred_check_branch
      %24 = sbr.rel (0) target = $region13
    $region12: #{fwd.1} parent=1 // pred_region
      _
    $region13: #{fwd.1} parent=1 // pred_fallthru
      _
    // Predicated region
    $region14: #{fwd.1} parent=1 // pred_check
      _
    $region15: #{fwd.1} parent=1 // pred_check_branch
      %26 = sbr.rel (0) target = $region17
    $region16: #{fwd.1} parent=1 // pred_region
      %27 = dma.done [#allocation3], 5120
    $region17: #{fwd.1} parent=1 // pred_fallthru
      _
    %v29 = vld [vmem:[%s0] sm:$0xff]
    %v30 = vpack.c.bf16 %v29, %v29
    %v31 = vld [vmem:[#allocation2] sm:$0xf]
    %v32 = vld [vmem:[#allocation2 + $0x4] sm:$0xf]
    %v33 = vld [vmem:[#allocation2 + $0x8] sm:$0xf]
    %v34 = vld [vmem:[#allocation2 + $0xc] sm:$0xf]
    %v35 = vld [vmem:[#allocation2 + $0x10] sm:$0xf]
    %v36 = vld [vmem:[#allocation2 + $0x14] sm:$0xf]
    %v37 = vld [vmem:[#allocation2 + $0x18] sm:$0xf]
    %v38 = vld [vmem:[#allocation2 + $0x1c] sm:$0xf]
    %v39 = vld [vmem:[#allocation2 + $0x20] sm:$0xf]
    %v40 = vld [vmem:[#allocation2 + $0x24] sm:$0xf]
    %v41 = vld [vmem:[#allocation2 + $0x28] sm:$0xf]
    %v42 = vld [vmem:[#allocation2 + $0x2c] sm:$0xf]
    %v43 = vld [vmem:[#allocation2 + $0x30] sm:$0xf]
    %v44 = vld [vmem:[#allocation2 + $0x34] sm:$0xf]
    %v45 = vld [vmem:[#allocation2 + $0x38] sm:$0xf]
    %v46 = vld [vmem:[#allocation2 + $0x3c] sm:$0xf]
    %v47 = vld [vmem:[%s2] sm:$0x1]
    %v48 = vlaneseq
    %v49 = vshrl.u32 %v48, 7
    %v50 = vsub.s32 0, %v49
    %v51 = vrot.slane %v47, %v50
    %v68 = vunpack.c.l.b16 %v31
    %v69 = vunpack.c.l.b16 %v32
    %v70 = vunpack.c.l.b16 %v33
    %v71 = vunpack.c.l.b16 %v34
    %v72 = vunpack.c.l.b16 %v35
    %v73 = vunpack.c.l.b16 %v36
    %v74 = vunpack.c.l.b16 %v37
    %v75 = vunpack.c.l.b16 %v38
    %v76 = vunpack.c.l.b16 %v39
    %v77 = vunpack.c.l.b16 %v40
    %v78 = vunpack.c.l.b16 %v41
    %v79 = vunpack.c.l.b16 %v42
    %v80 = vunpack.c.l.b16 %v43
    %v81 = vunpack.c.l.b16 %v44
    %v82 = vunpack.c.l.b16 %v45
    %v83 = vunpack.c.l.b16 %v46
    %v84 = vpack.c.b16 %v69, %v68
    %v85 = vpack.c.b16 %v71, %v70
    %v86 = vpack.c.b16 %v73, %v72
    %v87 = vpack.c.b16 %v75, %v74
    %v88 = vpack.c.b16 %v77, %v76
    %v89 = vpack.c.b16 %v79, %v78
    %v90 = vpack.c.b16 %v81, %v80
    %v91 = vpack.c.b16 %v83, %v82
    %100 = vmatprep.subr.bf16.mxu0 0
    %101 = vmatpush1.bf16.msra.mxu0 %v84
    %102 = vmatprep.subr.bf16.mxu0 0
    %103 = vmatpush1.bf16.msra.mxu0 %v85
    %104 = vmatprep.subr.bf16.mxu0 0
    %105 = vmatpush1.bf16.msra.mxu0 %v86
    %106 = vmatprep.subr.bf16.mxu0 0
    %107 = vmatpush1.bf16.msra.mxu0 %v87
    %108 = vmatprep.subr.bf16.mxu0 0
    %109 = vmatpush1.bf16.msra.mxu0 %v88
    %110 = vmatprep.subr.bf16.mxu0 0
    %111 = vmatpush1.bf16.msra.mxu0 %v89
    %112 = vmatprep.subr.bf16.mxu0 0
    %113 = vmatpush1.bf16.msra.mxu0 %v90
    %114 = vmatprep.subr.bf16.mxu0 0
    %115 = vmatpush1.bf16.msra.mxu0 %v91
    %116 = vmatprep.subr.bf16.mxu0 0
    %117 = vmatpush1.bf16.msra.mxu0 0
    %118 = vmatprep.subr.bf16.mxu0 0
    %119 = vmatpush1.bf16.msra.mxu0 0
    %120 = vmatprep.subr.bf16.mxu0 0
    %121 = vmatpush1.bf16.msra.mxu0 0
    %122 = vmatprep.subr.bf16.mxu0 0
    %123 = vmatpush1.bf16.msra.mxu0 0
    %124 = vmatprep.subr.bf16.mxu0 0
    %125 = vmatpush1.bf16.msra.mxu0 0
    %126 = vmatprep.subr.bf16.mxu0 0
    %127 = vmatpush1.bf16.msra.mxu0 0
    %128 = vmatprep.subr.bf16.mxu0 0
    %129 = vmatpush1.bf16.msra.mxu0 0
    %130 = vmatprep.subr.bf16.mxu0 0
    %131 = vmatpush1.bf16.msra.mxu0 0
    %132 = vmatprep.mubr.bf16.mxu0 0
    %133 = vmatmul.mubr.bf16.gmra.mrb[0].mxu0 %v30
    %v134 = vpop.f32.mrb[0].mxu0
    %v135 = vadd.f32 %v51, %v134
    %v136 = vpop.f32.mrb[0].mxu0
    %v137 = vpop.f32.mrb[0].mxu0
    %v138 = vpop.f32.mrb[0].mxu0
    %139 = vdwg.mxu0
    %v140 = vmax.f32 %v135, 0.0
    %v141 = vpack.c.bf16 %v140, %v140
    %s142 = scalar_lea.vmem [#allocation2], 64
    %v143 = vld [vmem:[%s142] sm:$0xf]
    %v144 = vld [vmem:[%s142 + $0x4] sm:$0xf]
    %v145 = vld [vmem:[%s142 + $0x8] sm:$0xf]
    %v146 = vld [vmem:[%s142 + $0xc] sm:$0xf]
    %v147 = vld [vmem:[%s142 + $0x10] sm:$0xf]
    %v148 = vld [vmem:[%s142 + $0x14] sm:$0xf]
    %v149 = vld [vmem:[%s142 + $0x18] sm:$0xf]
    %v150 = vld [vmem:[%s142 + $0x1c] sm:$0xf]
    %v151 = vld [vmem:[%s142 + $0x20] sm:$0xf]
    %v152 = vld [vmem:[%s142 + $0x24] sm:$0xf]
    %v153 = vld [vmem:[%s142 + $0x28] sm:$0xf]
    %v154 = vld [vmem:[%s142 + $0x2c] sm:$0xf]
    %v155 = vld [vmem:[%s142 + $0x30] sm:$0xf]
    %v156 = vld [vmem:[%s142 + $0x34] sm:$0xf]
    %v157 = vld [vmem:[%s142 + $0x38] sm:$0xf]
    %v158 = vld [vmem:[%s142 + $0x3c] sm:$0xf]
    %v159 = vld [vmem:[%s2 + $0x1] sm:$0x1]
    %v160 = vlaneseq
    %v161 = vshrl.u32 %v160, 7
    %v162 = vsub.s32 0, %v161
    %v163 = vrot.slane %v159, %v162
    %v180 = vunpack.c.l.b16 %v143
    %v181 = vunpack.c.l.b16 %v144
    %v182 = vunpack.c.l.b16 %v145
    %v183 = vunpack.c.l.b16 %v146
    %v184 = vunpack.c.l.b16 %v147
    %v185 = vunpack.c.l.b16 %v148
    %v186 = vunpack.c.l.b16 %v149
    %v187 = vunpack.c.l.b16 %v150
    %v188 = vunpack.c.l.b16 %v151
    %v189 = vunpack.c.l.b16 %v152
    %v190 = vunpack.c.l.b16 %v153
    %v191 = vunpack.c.l.b16 %v154
    %v192 = vunpack.c.l.b16 %v155
    %v193 = vunpack.c.l.b16 %v156
    %v194 = vunpack.c.l.b16 %v157
    %v195 = vunpack.c.l.b16 %v158
    %v196 = vpack.c.b16 %v181, %v180
    %v197 = vpack.c.b16 %v183, %v182
    %v198 = vpack.c.b16 %v185, %v184
    %v199 = vpack.c.b16 %v187, %v186
    %v200 = vpack.c.b16 %v189, %v188
    %v201 = vpack.c.b16 %v191, %v190
    %v202 = vpack.c.b16 %v193, %v192
    %v203 = vpack.c.b16 %v195, %v194
    %212 = vmatprep.subr.bf16.mxu0 0
    %213 = vmatpush1.bf16.msra.mxu0 %v196
    %214 = vmatprep.subr.bf16.mxu0 0
    %215 = vmatpush1.bf16.msra.mxu0 %v197
    %216 = vmatprep.subr.bf16.mxu0 0
    %217 = vmatpush1.bf16.msra.mxu0 %v198
    %218 = vmatprep.subr.bf16.mxu0 0
    %219 = vmatpush1.bf16.msra.mxu0 %v199
    %220 = vmatprep.subr.bf16.mxu0 0
    %221 = vmatpush1.bf16.msra.mxu0 %v200
    %222 = vmatprep.subr.bf16.mxu0 0
    %223 = vmatpush1.bf16.msra.mxu0 %v201
    %224 = vmatprep.subr.bf16.mxu0 0
    %225 = vmatpush1.bf16.msra.mxu0 %v202
    %226 = vmatprep.subr.bf16.mxu0 0
    %227 = vmatpush1.bf16.msra.mxu0 %v203
    %228 = vmatprep.subr.bf16.mxu0 0
    %229 = vmatpush1.bf16.msra.mxu0 0
    %230 = vmatprep.subr.bf16.mxu0 0
    %231 = vmatpush1.bf16.msra.mxu0 0
    %232 = vmatprep.subr.bf16.mxu0 0
    %233 = vmatpush1.bf16.msra.mxu0 0
    %234 = vmatprep.subr.bf16.mxu0 0
    %235 = vmatpush1.bf16.msra.mxu0 0
    %236 = vmatprep.subr.bf16.mxu0 0
    %237 = vmatpush1.bf16.msra.mxu0 0
    %238 = vmatprep.subr.bf16.mxu0 0
    %239 = vmatpush1.bf16.msra.mxu0 0
    %240 = vmatprep.subr.bf16.mxu0 0
    %241 = vmatpush1.bf16.msra.mxu0 0
    %242 = vmatprep.subr.bf16.mxu0 0
    %243 = vmatpush1.bf16.msra.mxu0 0
    %244 = vmatprep.mubr.bf16.mxu0 0
    %245 = vmatmul.mubr.bf16.gmra.mrb[0].mxu0 %v141
    %v246 = vpop.f32.mrb[0].mxu0
    %v247 = vadd.f32 %v163, %v246
    %v248 = vpop.f32.mrb[0].mxu0
    %v249 = vpop.f32.mrb[0].mxu0
    %v250 = vpop.f32.mrb[0].mxu0
    %251 = vdwg.mxu0
    %v252 = vmax.f32 %v247, 0.0
    %v253 = vpack.c.bf16 %v252, %v252
    %s254 = scalar_lea.vmem [#allocation2], 128
    %v255 = vld [vmem:[%s254] sm:$0xf]
    %v256 = vld [vmem:[%s254 + $0x4] sm:$0xf]
    %v257 = vld [vmem:[%s254 + $0x8] sm:$0xf]
    %v258 = vld [vmem:[%s254 + $0xc] sm:$0xf]
    %v259 = vld [vmem:[%s254 + $0x10] sm:$0xf]
    %v260 = vld [vmem:[%s254 + $0x14] sm:$0xf]
    %v261 = vld [vmem:[%s254 + $0x18] sm:$0xf]
    %v262 = vld [vmem:[%s254 + $0x1c] sm:$0xf]
    %v263 = vld [vmem:[%s254 + $0x20] sm:$0xf]
    %v264 = vld [vmem:[%s254 + $0x24] sm:$0xf]
    %v265 = vld [vmem:[%s254 + $0x28] sm:$0xf]
    %v266 = vld [vmem:[%s254 + $0x2c] sm:$0xf]
    %v267 = vld [vmem:[%s254 + $0x30] sm:$0xf]
    %v268 = vld [vmem:[%s254 + $0x34] sm:$0xf]
    %v269 = vld [vmem:[%s254 + $0x38] sm:$0xf]
    %v270 = vld [vmem:[%s254 + $0x3c] sm:$0xf]
    %v271 = vld [vmem:[%s2 + $0x2] sm:$0x1]
    %v272 = vlaneseq
    %v273 = vshrl.u32 %v272, 7
    %v274 = vsub.s32 0, %v273
    %v275 = vrot.slane %v271, %v274
    %v292 = vunpack.c.l.b16 %v255
    %v293 = vunpack.c.l.b16 %v256
    %v294 = vunpack.c.l.b16 %v257
    %v295 = vunpack.c.l.b16 %v258
    %v296 = vunpack.c.l.b16 %v259
    %v297 = vunpack.c.l.b16 %v260
    %v298 = vunpack.c.l.b16 %v261
    %v299 = vunpack.c.l.b16 %v262
    %v300 = vunpack.c.l.b16 %v263
    %v301 = vunpack.c.l.b16 %v264
    %v302 = vunpack.c.l.b16 %v265
    %v303 = vunpack.c.l.b16 %v266
    %v304 = vunpack.c.l.b16 %v267
    %v305 = vunpack.c.l.b16 %v268
    %v306 = vunpack.c.l.b16 %v269
    %v307 = vunpack.c.l.b16 %v270
    %v308 = vpack.c.b16 %v293, %v292
    %v309 = vpack.c.b16 %v295, %v294
    %v310 = vpack.c.b16 %v297, %v296
    %v311 = vpack.c.b16 %v299, %v298
    %v312 = vpack.c.b16 %v301, %v300
    %v313 = vpack.c.b16 %v303, %v302
    %v314 = vpack.c.b16 %v305, %v304
    %v315 = vpack.c.b16 %v307, %v306
    %324 = vmatprep.subr.bf16.mxu0 0
    %325 = vmatpush1.bf16.msra.mxu0 %v308
    %326 = vmatprep.subr.bf16.mxu0 0
    %327 = vmatpush1.bf16.msra.mxu0 %v309
    %328 = vmatprep.subr.bf16.mxu0 0
    %329 = vmatpush1.bf16.msra.mxu0 %v310
    %330 = vmatprep.subr.bf16.mxu0 0
    %331 = vmatpush1.bf16.msra.mxu0 %v311
    %332 = vmatprep.subr.bf16.mxu0 0
    %333 = vmatpush1.bf16.msra.mxu0 %v312
    %334 = vmatprep.subr.bf16.mxu0 0
    %335 = vmatpush1.bf16.msra.mxu0 %v313
    %336 = vmatprep.subr.bf16.mxu0 0
    %337 = vmatpush1.bf16.msra.mxu0 %v314
    %338 = vmatprep.subr.bf16.mxu0 0
    %339 = vmatpush1.bf16.msra.mxu0 %v315
    %340 = vmatprep.subr.bf16.mxu0 0
    %341 = vmatpush1.bf16.msra.mxu0 0
    %342 = vmatprep.subr.bf16.mxu0 0
    %343 = vmatpush1.bf16.msra.mxu0 0
    %344 = vmatprep.subr.bf16.mxu0 0
    %345 = vmatpush1.bf16.msra.mxu0 0
    %346 = vmatprep.subr.bf16.mxu0 0
    %347 = vmatpush1.bf16.msra.mxu0 0
    %348 = vmatprep.subr.bf16.mxu0 0
    %349 = vmatpush1.bf16.msra.mxu0 0
    %350 = vmatprep.subr.bf16.mxu0 0
    %351 = vmatpush1.bf16.msra.mxu0 0
    %352 = vmatprep.subr.bf16.mxu0 0
    %353 = vmatpush1.bf16.msra.mxu0 0
    %354 = vmatprep.subr.bf16.mxu0 0
    %355 = vmatpush1.bf16.msra.mxu0 0
    %356 = vmatprep.mubr.bf16.mxu0 0
    %357 = vmatmul.mubr.bf16.gmra.mrb[0].mxu0 %v253
    %v358 = vpop.f32.mrb[0].mxu0
    %v359 = vadd.f32 %v275, %v358
    %v360 = vpop.f32.mrb[0].mxu0
    %v361 = vpop.f32.mrb[0].mxu0
    %v362 = vpop.f32.mrb[0].mxu0
    %363 = vdwg.mxu0
    %v364 = vmax.f32 %v359, 0.0
    %v365 = vpack.c.bf16 %v364, %v364
    %s366 = scalar_lea.vmem [#allocation2], 192
    %v367 = vld [vmem:[%s366] sm:$0xf]
    %v368 = vld [vmem:[%s366 + $0x4] sm:$0xf]
    %v369 = vld [vmem:[%s366 + $0x8] sm:$0xf]
    %v370 = vld [vmem:[%s366 + $0xc] sm:$0xf]
    %v371 = vld [vmem:[%s366 + $0x10] sm:$0xf]
    %v372 = vld [vmem:[%s366 + $0x14] sm:$0xf]
    %v373 = vld [vmem:[%s366 + $0x18] sm:$0xf]
    %v374 = vld [vmem:[%s366 + $0x1c] sm:$0xf]
    %v375 = vld [vmem:[%s366 + $0x20] sm:$0xf]
    %v376 = vld [vmem:[%s366 + $0x24] sm:$0xf]
    %v377 = vld [vmem:[%s366 + $0x28] sm:$0xf]
    %v378 = vld [vmem:[%s366 + $0x2c] sm:$0xf]
    %v379 = vld [vmem:[%s366 + $0x30] sm:$0xf]
    %v380 = vld [vmem:[%s366 + $0x34] sm:$0xf]
    %v381 = vld [vmem:[%s366 + $0x38] sm:$0xf]
    %v382 = vld [vmem:[%s366 + $0x3c] sm:$0xf]
    %v383 = vld [vmem:[%s2 + $0x3] sm:$0x1]
    %v384 = vlaneseq
    %v385 = vshrl.u32 %v384, 7
    %v386 = vsub.s32 0, %v385
    %v387 = vrot.slane %v383, %v386
    %v404 = vunpack.c.l.b16 %v367
    %v405 = vunpack.c.l.b16 %v368
    %v406 = vunpack.c.l.b16 %v369
    %v407 = vunpack.c.l.b16 %v370
    %v408 = vunpack.c.l.b16 %v371
    %v409 = vunpack.c.l.b16 %v372
    %v410 = vunpack.c.l.b16 %v373
    %v411 = vunpack.c.l.b16 %v374
    %v412 = vunpack.c.l.b16 %v375
    %v413 = vunpack.c.l.b16 %v376
    %v414 = vunpack.c.l.b16 %v377
    %v415 = vunpack.c.l.b16 %v378
    %v416 = vunpack.c.l.b16 %v379
    %v417 = vunpack.c.l.b16 %v380
    %v418 = vunpack.c.l.b16 %v381
    %v419 = vunpack.c.l.b16 %v382
    %v420 = vpack.c.b16 %v405, %v404
    %v421 = vpack.c.b16 %v407, %v406
    %v422 = vpack.c.b16 %v409, %v408
    %v423 = vpack.c.b16 %v411, %v410
    %v424 = vpack.c.b16 %v413, %v412
    %v425 = vpack.c.b16 %v415, %v414
    %v426 = vpack.c.b16 %v417, %v416
    %v427 = vpack.c.b16 %v419, %v418
    %436 = vmatprep.subr.bf16.mxu0 0
    %437 = vmatpush1.bf16.msra.mxu0 %v420
    %438 = vmatprep.subr.bf16.mxu0 0
    %439 = vmatpush1.bf16.msra.mxu0 %v421
    %440 = vmatprep.subr.bf16.mxu0 0
    %441 = vmatpush1.bf16.msra.mxu0 %v422
    %442 = vmatprep.subr.bf16.mxu0 0
    %443 = vmatpush1.bf16.msra.mxu0 %v423
    %444 = vmatprep.subr.bf16.mxu0 0
    %445 = vmatpush1.bf16.msra.mxu0 %v424
    %446 = vmatprep.subr.bf16.mxu0 0
    %447 = vmatpush1.bf16.msra.mxu0 %v425
    %448 = vmatprep.subr.bf16.mxu0 0
    %449 = vmatpush1.bf16.msra.mxu0 %v426
    %450 = vmatprep.subr.bf16.mxu0 0
    %451 = vmatpush1.bf16.msra.mxu0 %v427
    %452 = vmatprep.subr.bf16.mxu0 0
    %453 = vmatpush1.bf16.msra.mxu0 0
    %454 = vmatprep.subr.bf16.mxu0 0
    %455 = vmatpush1.bf16.msra.mxu0 0
    %456 = vmatprep.subr.bf16.mxu0 0
    %457 = vmatpush1.bf16.msra.mxu0 0
    %458 = vmatprep.subr.bf16.mxu0 0
    %459 = vmatpush1.bf16.msra.mxu0 0
    %460 = vmatprep.subr.bf16.mxu0 0
    %461 = vmatpush1.bf16.msra.mxu0 0
    %462 = vmatprep.subr.bf16.mxu0 0
    %463 = vmatpush1.bf16.msra.mxu0 0
    %464 = vmatprep.subr.bf16.mxu0 0
    %465 = vmatpush1.bf16.msra.mxu0 0
    %466 = vmatprep.subr.bf16.mxu0 0
    %467 = vmatpush1.bf16.msra.mxu0 0
    %468 = vmatprep.mubr.bf16.mxu0 0
    %469 = vmatmul.mubr.bf16.gmra.mrb[0].mxu0 %v365
    %v470 = vpop.f32.mrb[0].mxu0
    %v471 = vadd.f32 %v387, %v470
    %v472 = vpop.f32.mrb[0].mxu0
    %v473 = vpop.f32.mrb[0].mxu0
    %v474 = vpop.f32.mrb[0].mxu0
    %475 = vdwg.mxu0
    %v476 = vmax.f32 %v471, 0.0
    %v477 = vpack.c.bf16 %v476, %v476
    %s478 = scalar_lea.vmem [#allocation2], 256
    %v479 = vld [vmem:[%s478] sm:$0xf]
    %v480 = vld [vmem:[%s478 + $0x4] sm:$0xf]
    %v481 = vld [vmem:[%s478 + $0x8] sm:$0xf]
    %v482 = vld [vmem:[%s478 + $0xc] sm:$0xf]
    %v483 = vld [vmem:[%s478 + $0x10] sm:$0xf]
    %v484 = vld [vmem:[%s478 + $0x14] sm:$0xf]
    %v485 = vld [vmem:[%s478 + $0x18] sm:$0xf]
    %v486 = vld [vmem:[%s478 + $0x1c] sm:$0xf]
    %v487 = vld [vmem:[%s478 + $0x20] sm:$0xf]
    %v488 = vld [vmem:[%s478 + $0x24] sm:$0xf]
    %v489 = vld [vmem:[%s478 + $0x28] sm:$0xf]
    %v490 = vld [vmem:[%s478 + $0x2c] sm:$0xf]
    %v491 = vld [vmem:[%s478 + $0x30] sm:$0xf]
    %v492 = vld [vmem:[%s478 + $0x34] sm:$0xf]
    %v493 = vld [vmem:[%s478 + $0x38] sm:$0xf]
    %v494 = vld [vmem:[%s478 + $0x3c] sm:$0xf]
    %v495 = vld [vmem:[%s2 + $0x4] sm:$0x1]
    %v496 = vlaneseq
    %v497 = vshrl.u32 %v496, 7
    %v498 = vsub.s32 0, %v497
    %v499 = vrot.slane %v495, %v498
    %v516 = vunpack.c.l.b16 %v479
    %v517 = vunpack.c.l.b16 %v480
    %v518 = vunpack.c.l.b16 %v481
    %v519 = vunpack.c.l.b16 %v482
    %v520 = vunpack.c.l.b16 %v483
    %v521 = vunpack.c.l.b16 %v484
    %v522 = vunpack.c.l.b16 %v485
    %v523 = vunpack.c.l.b16 %v486
    %v524 = vunpack.c.l.b16 %v487
    %v525 = vunpack.c.l.b16 %v488
    %v526 = vunpack.c.l.b16 %v489
    %v527 = vunpack.c.l.b16 %v490
    %v528 = vunpack.c.l.b16 %v491
    %v529 = vunpack.c.l.b16 %v492
    %v530 = vunpack.c.l.b16 %v493
    %v531 = vunpack.c.l.b16 %v494
    %v532 = vpack.c.b16 %v517, %v516
    %v533 = vpack.c.b16 %v519, %v518
    %v534 = vpack.c.b16 %v521, %v520
    %v535 = vpack.c.b16 %v523, %v522
    %v536 = vpack.c.b16 %v525, %v524
    %v537 = vpack.c.b16 %v527, %v526
    %v538 = vpack.c.b16 %v529, %v528
    %v539 = vpack.c.b16 %v531, %v530
    %548 = vmatprep.subr.bf16.mxu0 0
    %549 = vmatpush1.bf16.msra.mxu0 %v532
    %550 = vmatprep.subr.bf16.mxu0 0
    %551 = vmatpush1.bf16.msra.mxu0 %v533
    %552 = vmatprep.subr.bf16.mxu0 0
    %553 = vmatpush1.bf16.msra.mxu0 %v534
    %554 = vmatprep.subr.bf16.mxu0 0
    %555 = vmatpush1.bf16.msra.mxu0 %v535
    %556 = vmatprep.subr.bf16.mxu0 0
    %557 = vmatpush1.bf16.msra.mxu0 %v536
    %558 = vmatprep.subr.bf16.mxu0 0
    %559 = vmatpush1.bf16.msra.mxu0 %v537
    %560 = vmatprep.subr.bf16.mxu0 0
    %561 = vmatpush1.bf16.msra.mxu0 %v538
    %562 = vmatprep.subr.bf16.mxu0 0
    %563 = vmatpush1.bf16.msra.mxu0 %v539
    %564 = vmatprep.subr.bf16.mxu0 0
    %565 = vmatpush1.bf16.msra.mxu0 0
    %566 = vmatprep.subr.bf16.mxu0 0
    %567 = vmatpush1.bf16.msra.mxu0 0
    %568 = vmatprep.subr.bf16.mxu0 0
    %569 = vmatpush1.bf16.msra.mxu0 0
    %570 = vmatprep.subr.bf16.mxu0 0
    %571 = vmatpush1.bf16.msra.mxu0 0
    %572 = vmatprep.subr.bf16.mxu0 0
    %573 = vmatpush1.bf16.msra.mxu0 0
    %574 = vmatprep.subr.bf16.mxu0 0
    %575 = vmatpush1.bf16.msra.mxu0 0
    %576 = vmatprep.subr.bf16.mxu0 0
    %577 = vmatpush1.bf16.msra.mxu0 0
    %578 = vmatprep.subr.bf16.mxu0 0
    %579 = vmatpush1.bf16.msra.mxu0 0
    %580 = vmatprep.mubr.bf16.mxu0 0
    %581 = vmatmul.mubr.bf16.gmra.mrb[0].mxu0 %v477
    %v582 = vpop.f32.mrb[0].mxu0
    %v583 = vadd.f32 %v499, %v582
    %v584 = vpop.f32.mrb[0].mxu0
    %v585 = vpop.f32.mrb[0].mxu0
    %v586 = vpop.f32.mrb[0].mxu0
    %587 = vdwg.mxu0
    %v588 = vld [vmem:[%s2 + $0x5] sm:$0x1]
    %v589 = vld [vmem:[%s2 + $0x6] sm:$0x1]
    %v590 = vlaneseq
    %v591 = vshrl.u32 %v590, 7
    %v592 = vsub.s32 0, %v591
    %v593 = vrot.slane %v589, %v592
    %v594 = vmin.f32 %v583, %v593
    %v595 = vlaneseq
    %v596 = vshrl.u32 %v595, 7
    %v597 = vsub.s32 0, %v596
    %v598 = vrot.slane %v588, %v597
    %v599 = vmax.f32 %v594, %v598
    %600 = vst [vmem:[%s3] sm:$0xff] %v599
    // Predicated region
    $region18: #{fwd.1} parent=1 // pred_check
      _
    $region19: #{fwd.1} parent=1 // pred_check_branch
      %602 = sbr.rel (0) target = $region21
    $region20: #{fwd.1} parent=1 // pred_region
      _
    $region21: #{fwd.1} parent=1 // pred_fallthru
      _
    // Predicated region
    $region22: #{fwd.1} parent=1 // pred_check
      _
    $region23: #{fwd.1} parent=1 // pred_check_branch
      %604 = sbr.rel (0) target = $region25
    $region24: #{fwd.1} parent=1 // pred_region
      _
    $region25: #{fwd.1} parent=1 // pred_fallthru
      _
    %605 = vsyncpa [#allocation3], 1

</llo_original>
